<compile_context>
chip_gen: v7x
topology: tpu7x:2x2x1
jax: 0.10.0
libtpu: 0.0.40
codegen_flags: <defaults>
</compile_context>

<pallas_src>
import jax
import jax.numpy as jnp
from jax import lax
from jax.experimental import pallas as pl
from jax.experimental.pallas import tpu as pltpu


# -----------------------------------------------------------------------------
# Pass 1: hoisted 1x1-conv projections (theta / phi / [g ; 1 ; 0...])
# -----------------------------------------------------------------------------
def nl_proj_kernel(x_ref, wt_ref, bt_ref, wp_ref, bp_ref, wga_ref, bga_ref,
                   tho_ref, pho_ref, go_ref):
    """One (batch, spatial-tile) step: three bf16 MXU matmuls, f32 accumulate."""
    x = x_ref[...]                                                    # (C, ts) bf16
    th = jnp.dot(wt_ref[...], x, preferred_element_type=jnp.float32) + bt_ref[...]
    ph = jnp.dot(wp_ref[...], x, preferred_element_type=jnp.float32) + bp_ref[...]
    ga = jnp.dot(wga_ref[...], x, preferred_element_type=jnp.float32) + bga_ref[...]
    # theta / g stored sequence-major: the per-kv-step matmuls in pass 2 become
    # standard (M,K)x(K,N) contractions; these transposes run once per element.
    tho_ref[...] = th.T.astype(jnp.bfloat16)                          # (ts, Ci)
    pho_ref[...] = ph.astype(jnp.bfloat16)                            # (Ci, ts)
    go_ref[...] = ga.T.astype(jnp.bfloat16)                           # (ts, Cg)


# -----------------------------------------------------------------------------
# Pass 2: flash-style non-local attention + W_z projection
# -----------------------------------------------------------------------------
def nl_attn_kernel(th_ref, ph_ref, g_ref, wz_ref, bz_ref, out_ref, m_sc, acc_sc):
    """One (batch, q-tile, kv-tile) grid step of the non-local attention."""
    ci = ph_ref.shape[0]                      # true inter_channels
    ki = pl.program_id(2)

    # --- per-q-tile init of the online-softmax state --------------------------
    @pl.when(ki == 0)
    def _init():
        m_sc[...] = jnp.full_like(m_sc, -jnp.inf)
        acc_sc[...] = jnp.zeros_like(acc_sc)

    # --- scores f[q, k] = theta[q, :] . phi[:, k]  (bf16 in, f32 accumulate) ---
    f = jnp.dot(th_ref[...], ph_ref[...],
                preferred_element_type=jnp.float32)                   # (tq, tk)

    # --- online softmax (f32 statistics; exp stays f32 -> v5e-safe) -----------
    m_prev = m_sc[...]                                                # (tq, 1)
    m_new = jnp.maximum(m_prev, jnp.max(f, axis=-1, keepdims=True))
    alpha = jnp.exp(m_prev - m_new)                                   # (tq, 1)
    p = jnp.exp(f - m_new)                                            # (tq, tk)

    # --- PV matmul; the ones column baked into g also accumulates the softmax
    #     denominator (column `ci` of acc) -> no per-step XLU row-reduce -------
    acc_sc[...] = alpha * acc_sc[...] + jnp.dot(
        p.astype(jnp.bfloat16), g_ref[...], preferred_element_type=jnp.float32)
    m_sc[...] = m_new

    # --- finalize per q-tile: exact normalize, W_z projection, lane-dense store
    @pl.when(ki == pl.num_programs(2) - 1)
    def _finalize():
        acc = acc_sc[...]
        y = acc[:, :ci] / acc[:, ci:ci + 1]                           # (tq, Ci)
        wy = lax.dot_general(wz_ref[...], y.astype(jnp.bfloat16),
                             (((1,), (1,)), ((), ())),
                             preferred_element_type=jnp.float32) + bz_ref[...]
        out_ref[...] = wy                                             # (C, tq)


# -----------------------------------------------------------------------------
# Generation-aware tile / VMEM sizing helpers
# -----------------------------------------------------------------------------
def _round_up(x, m):
    return ((x + m - 1) // m) * m


def _vmem_capacity_bytes():
    try:
        return int(pltpu.get_tpu_info().vmem_capacity_bytes)
    except Exception:
        return 64 * 1024 * 1024            # conservative fallback (v7x per-core VMEM)


def _vmem_limit(estimate, capacity):
    return int(min(max(2 * estimate, 32 * 1024 * 1024), int(0.9 * capacity)))


def _pick_tile(S, ladder=(512, 256, 128)):
    for t in ladder:
        if S % t == 0:
            return t
    return S                               # odd spatial extents: full dim is a legal block


def _proj_vmem_estimate(C, ci, cg, ts):
    bf, f32 = 2, 4
    io = 2 * (C * ts * bf + (2 * ci + cg) * ts * bf)       # double-buffered x + outputs
    wts = 2 * ((2 * ci + cg) * C * bf + 3 * max(cg, 8) * 128 * f32)
    temps = 4 * (2 * ci + cg) * ts * f32
    return io + wts + temps


def _attn_vmem_estimate(C, ci, cg, tq, tk):
    bf, f32, lane = 2, 4, 128
    io = 2 * (tq * ci * bf + ci * tk * bf + tk * cg * bf + C * tq * f32)
    wts = 2 * (C * ci * bf + C * lane * f32)
    scratch = tq * lane * f32 + tq * max(cg, lane) * f32
    temps = 4 * tq * tk * f32
    return io + wts + scratch + temps


def _pick_attn_tiles(S, C, ci, cg, capacity):
    budget = int(0.6 * capacity)
    for tq in (1024, 512, 256, 128):       # larger tq -> fewer kv-side HBM re-reads
        if S % tq:
            continue
        for tk in (512, 256, 128):
            if S % tk:
                continue
            if _attn_vmem_estimate(C, ci, cg, tq, tk) <= budget:
                return tq, tk
    t = S if S % 128 else 128
    return t, t


# -----------------------------------------------------------------------------
# Wrappers
# -----------------------------------------------------------------------------
def nl_attention_pallas(x_nchw, params, *, tq=None, tk=None, ts=None):
    """Returns W_z(attention(x)) pre-BN, shape (B, C, S), float32."""
    B, C, H, W = x_nchw.shape
    S = H * W
    Ci = params["wg"].shape[0]
    Cg = _round_up(Ci + 1, 8)              # g channels + ones row, sublane-aligned
    capacity = _vmem_capacity_bytes()

    x_bf = x_nchw.reshape(B, C, S).astype(jnp.bfloat16)

    # g-side weights augmented with a ones row (and zero pad rows) so the
    # projection emits [g ; 1 ; 0...] directly.
    pad = Cg - Ci
    wga = jnp.concatenate([params["wg"], jnp.zeros((pad, C), jnp.float32)], axis=0)
    bga = jnp.concatenate([params["bg"], jnp.ones((1, 1), jnp.float32),
                           jnp.zeros((pad - 1, 1), jnp.float32)], axis=0)

    wt = params["wt"].astype(jnp.bfloat16)
    wp = params["wp"].astype(jnp.bfloat16)
    wga = wga.astype(jnp.bfloat16)
    wz = params["wz"].astype(jnp.bfloat16)

    # ---------------- pass 1: hoisted 1x1-conv projections --------------------
    if ts is None:
        ts = _pick_tile(S)
    assert S % ts == 0
    ns = S // ts
    cmap = lambda b, si: (0, 0)

    proj_est = _proj_vmem_estimate(C, Ci, Cg, ts)
    theta_t, phi, g_aug = pl.pallas_call(
        nl_proj_kernel,
        out_shape=(jax.ShapeDtypeStruct((B, S, Ci), jnp.bfloat16),
                   jax.ShapeDtypeStruct((B, Ci, S), jnp.bfloat16),
                   jax.ShapeDtypeStruct((B, S, Cg), jnp.bfloat16)),
        grid_spec=pltpu.PrefetchScalarGridSpec(
            num_scalar_prefetch=0,
            grid=(B, ns),
            in_specs=[
                pl.BlockSpec((pl.Squeezed(), C, ts), lambda b, si: (b, 0, si)),
                pl.BlockSpec((Ci, C), cmap), pl.BlockSpec((Ci, 1), cmap),
                pl.BlockSpec((Ci, C), cmap), pl.BlockSpec((Ci, 1), cmap),
                pl.BlockSpec((Cg, C), cmap), pl.BlockSpec((Cg, 1), cmap),
            ],
            out_specs=(
                pl.BlockSpec((pl.Squeezed(), ts, Ci), lambda b, si: (b, si, 0)),
                pl.BlockSpec((pl.Squeezed(), Ci, ts), lambda b, si: (b, 0, si)),
                pl.BlockSpec((pl.Squeezed(), ts, Cg), lambda b, si: (b, si, 0)),
            )),
        compiler_params=pltpu.CompilerParams(
            dimension_semantics=("parallel", "parallel"),
            vmem_limit_bytes=_vmem_limit(proj_est, capacity)),
        cost_estimate=pl.CostEstimate(
            flops=int(2 * B * (2 * Ci + Cg) * C * S),
            transcendentals=0,
            bytes_accessed=int(B * S * (C + 2 * Ci + Cg) * 2)),
    )(x_bf, wt, params["bt"], wp, params["bp"], wga, bga)

    # ---------------- pass 2: flash-style attention + W_z ---------------------
    if tq is None or tk is None:
        atq, atk = _pick_attn_tiles(S, C, Ci, Cg, capacity)
        tq = tq if tq is not None else atq
        tk = tk if tk is not None else atk
    assert S % tq == 0 and S % tk == 0, "spatial size must be divisible by tiles"
    nq, nk = S // tq, S // tk
    wmap = lambda b, qi, ki: (0, 0)

    attn_est = _attn_vmem_estimate(C, Ci, Cg, tq, tk)
    flops = B * (2 * (Ci + Cg) * S * S + 2 * C * Ci * S)
    wy = pl.pallas_call(
        nl_attn_kernel,
        out_shape=jax.ShapeDtypeStruct((B, C, S), jnp.float32),
        grid_spec=pltpu.PrefetchScalarGridSpec(
            num_scalar_prefetch=0,
            grid=(B, nq, nk),
            in_specs=[
                pl.BlockSpec((pl.Squeezed(), tq, Ci), lambda b, qi, ki: (b, qi, 0)),
                pl.BlockSpec((pl.Squeezed(), Ci, tk), lambda b, qi, ki: (b, 0, ki)),
                pl.BlockSpec((pl.Squeezed(), tk, Cg), lambda b, qi, ki: (b, ki, 0)),
                pl.BlockSpec((C, Ci), wmap),
                pl.BlockSpec((C, 1), wmap),
            ],
            out_specs=pl.BlockSpec((pl.Squeezed(), C, tq),
                                   lambda b, qi, ki: (b, 0, qi)),
            scratch_shapes=[
                pltpu.VMEM((tq, 1), jnp.float32),        # running max m
                pltpu.VMEM((tq, Cg), jnp.float32),       # [unnormalized y | l | pad]
            ]),
        compiler_params=pltpu.CompilerParams(
            dimension_semantics=("parallel", "parallel", "arbitrary"),
            vmem_limit_bytes=_vmem_limit(attn_est, capacity)),
        cost_estimate=pl.CostEstimate(
            flops=int(flops),
            transcendentals=int(B * S * S),
            bytes_accessed=int(B * (S * Ci * 2 + nq * S * (Ci + Cg) * 2 + C * S * 4)),
        ),
    )(theta_t, phi, g_aug, wz, params["bz"])
    return wy


def nl_block_pallas(x_nchw, params, *, tq=None, tk=None, ts=None):
    """Full NLBlockND forward: projections + attention + W_z (Pallas);
    BatchNorm (training-mode batch stats) + residual (JAX glue)."""
    B, C, H, W = x_nchw.shape
    S = H * W
    wy = nl_attention_pallas(x_nchw, params, tq=tq, tk=tk, ts=ts)     # (B, C, S) f32
    x_flat = x_nchw.reshape(B, C, S).astype(jnp.float32)

    # BatchNorm2d batch statistics in a single fused stats pass, then
    # normalize + residual in one elementwise pass.
    eps = 1e-5
    mean = jnp.mean(wy, axis=(0, 2), keepdims=True)
    var = jnp.maximum(jnp.mean(wy * wy, axis=(0, 2), keepdims=True) - mean * mean, 0.0)
    gamma = params["bn_gamma"].reshape(1, C, 1)
    beta = params["bn_beta"].reshape(1, C, 1)
    z = (wy - mean) * lax.rsqrt(var + eps) * gamma + beta + x_flat
    return z.reshape(B, C, H, W), wy


# -----------------------------------------------------------------------------
# Pure-JAX reference (f32 everywhere) for verification
# -----------------------------------------------------------------------------
def _reference(x_nchw, params):
    B, C, H, W = x_nchw.shape
    S = H * W
    x = x_nchw.reshape(B, C, S).astype(jnp.float32)
    g = jnp.einsum("ic,bcs->bis", params["wg"], x) + params["bg"][None]
    th = jnp.einsum("ic,bcs->bis", params["wt"], x) + params["bt"][None]
    ph = jnp.einsum("ic,bcs->bis", params["wp"], x) + params["bp"][None]
    f = jnp.einsum("bis,bit->bst", th, ph)
    attn = jax.nn.softmax(f, axis=-1)
    y = jnp.einsum("bst,bit->bsi", attn, g)
    wy = jnp.einsum("ci,bsi->bcs", params["wz"], y) + params["bz"][None]
    eps = 1e-5
    mean = jnp.mean(wy, axis=(0, 2), keepdims=True)
    var = jnp.mean((wy - mean) ** 2, axis=(0, 2), keepdims=True)
    bn = (wy - mean) / jnp.sqrt(var + eps) * params["bn_gamma"].reshape(1, C, 1) \
        + params["bn_beta"].reshape(1, C, 1)
    return wy, (bn + x).reshape(B, C, H, W)


def make_params(key, in_channels, inter_channels):
    ks = jax.random.split(key, 10)
    sc_in = 1.0 / jnp.sqrt(in_channels)
    sc_int = 1.0 / jnp.sqrt(inter_channels)
    return {
        # 1x1 conv weights are (out_ch, in_ch)
        "wg": jax.random.uniform(ks[0], (inter_channels, in_channels), jnp.float32, -sc_in, sc_in),
        "bg": jax.random.uniform(ks[1], (inter_channels, 1), jnp.float32, -sc_in, sc_in),
        "wt": jax.random.uniform(ks[2], (inter_channels, in_channels), jnp.float32, -sc_in, sc_in),
        "bt": jax.random.uniform(ks[3], (inter_channels, 1), jnp.float32, -sc_in, sc_in),
        "wp": jax.random.uniform(ks[4], (inter_channels, in_channels), jnp.float32, -sc_in, sc_in),
        "bp": jax.random.uniform(ks[5], (inter_channels, 1), jnp.float32, -sc_in, sc_in),
        "wz": jax.random.uniform(ks[6], (in_channels, inter_channels), jnp.float32, -sc_int, sc_int),
        "bz": jax.random.uniform(ks[7], (in_channels, 1), jnp.float32, -sc_int, sc_int),
        # NLBlockND.__init__ zero-inits BN gamma/beta (which would make z == x);
        # non-zero values are used here so the end-to-end check actually
        # exercises the attention path (forward semantics are identical).
        "bn_gamma": jax.random.uniform(ks[8], (in_channels,), jnp.float32, 0.5, 1.0),
        "bn_beta": jax.random.uniform(ks[9], (in_channels,), jnp.float32, -0.5, 0.5),
    }


if __name__ == "__main__":
    # dimension=2 -> x is (N, C, H, W); inter_channels defaults to C // 2.
    B, C, H, W = 2, 32, 16, 16          # S = H*W = 256
    inter = C // 2

    key = jax.random.PRNGKey(0)
    kx, kp = jax.random.split(key)
    x = jax.random.normal(kx, (B, C, H, W), jnp.float32)
    params = make_params(kp, C, inter)

    # tq = tk = 128 -> 2 q-tiles x 2 kv-tiles: exercises the online softmax
    # across kv tiles and the per-q-tile resident accumulator.
    z, wy = nl_block_pallas(x, params, tq=128, tk=128)
    z = jax.block_until_ready(z)
    wy = jax.block_until_ready(wy)

    wy_ref, z_ref = _reference(x, params)
    # Pre-BN attention output: bf16 MXU inputs -> loosened elementwise tolerance.
    assert jnp.allclose(wy, wy_ref, atol=5e-2, rtol=5e-2), "wy mismatch vs JAX reference"
    # Full block: BatchNorm's 1/std amplifies bf16 noise elementwise, so check
    # the relative Frobenius error of z instead.
    rel = float(jnp.linalg.norm(z - z_ref) / jnp.linalg.norm(z_ref))
    assert rel < 5e-2, f"z relative error too large: {rel}"

    print("KERNEL_OK")
</pallas_src>

<mosaic_0001>
module attributes {stable_mosaic.version = 11 : i64} {
  func.func @nl_proj_kernel(%arg0: i32, %arg1: i32, %arg2: memref<1x32x256xbf16, #tpu.memory_space<vmem>>, %arg3: memref<16x32xbf16, #tpu.memory_space<vmem>>, %arg4: memref<16x1xf32, #tpu.memory_space<vmem>>, %arg5: memref<16x32xbf16, #tpu.memory_space<vmem>>, %arg6: memref<16x1xf32, #tpu.memory_space<vmem>>, %arg7: memref<24x32xbf16, #tpu.memory_space<vmem>>, %arg8: memref<24x1xf32, #tpu.memory_space<vmem>>, %arg9: memref<1x256x16xbf16, #tpu.memory_space<vmem>>, %arg10: memref<1x16x256xbf16, #tpu.memory_space<vmem>>, %arg11: memref<1x256x24xbf16, #tpu.memory_space<vmem>>) attributes {dimension_semantics = [#tpu.dimension_semantics<parallel>, #tpu.dimension_semantics<parallel>], iteration_bounds = array<i64: 2, 1>, scalar_prefetch = 0 : i64, scratch_operands = 0 : i64, tpu.core_type = #tpu.core_type<tc>, window_params = [{transform_indices = @transform_0, window_bounds = array<i64: 1, 32, 256>}, {pipeline_mode = #tpu.pipeline_mode<synchronous>, transform_indices = @transform_1, window_bounds = array<i64: 16, 32>}, {pipeline_mode = #tpu.pipeline_mode<synchronous>, transform_indices = @transform_2, window_bounds = array<i64: 16, 1>}, {pipeline_mode = #tpu.pipeline_mode<synchronous>, transform_indices = @transform_3, window_bounds = array<i64: 16, 32>}, {pipeline_mode = #tpu.pipeline_mode<synchronous>, transform_indices = @transform_4, window_bounds = array<i64: 16, 1>}, {pipeline_mode = #tpu.pipeline_mode<synchronous>, transform_indices = @transform_5, window_bounds = array<i64: 24, 32>}, {pipeline_mode = #tpu.pipeline_mode<synchronous>, transform_indices = @transform_6, window_bounds = array<i64: 24, 1>}, {transform_indices = @transform_7, window_bounds = array<i64: 1, 256, 16>}, {transform_indices = @transform_8, window_bounds = array<i64: 1, 16, 256>}, {transform_indices = @transform_9, window_bounds = array<i64: 1, 256, 24>}]} {
    %c0 = arith.constant 0 : index
    %c0_0 = arith.constant 0 : index
    %c0_1 = arith.constant 0 : index
    %0 = vector.load %arg2[%c0, %c0_0, %c0_1] : memref<1x32x256xbf16, #tpu.memory_space<vmem>>, vector<1x32x256xbf16>
    %1 = vector.shape_cast %0 : vector<1x32x256xbf16> to vector<32x256xbf16>
    %c0_2 = arith.constant 0 : index
    %c0_3 = arith.constant 0 : index
    %2 = vector.load %arg3[%c0_2, %c0_3] : memref<16x32xbf16, #tpu.memory_space<vmem>>, vector<16x32xbf16>
    %cst = arith.constant dense<0.000000e+00> : vector<16x256xf32>
    %3 = tpu.matmul %2, %1, %cst {dimension_numbers = #tpu.dot_dimension_numbers<[1], [0], [0], [1], [0, 0, 1, 1], [], []>} : vector<16x32xbf16>, vector<32x256xbf16>, vector<16x256xf32> -> vector<16x256xf32>
    %c0_4 = arith.constant 0 : index
    %c0_5 = arith.constant 0 : index
    %4 = vector.load %arg4[%c0_4, %c0_5] : memref<16x1xf32, #tpu.memory_space<vmem>>, vector<16x1xf32>
    %5 = vector.broadcast %4 : vector<16x1xf32> to vector<16x256xf32>
    %6 = arith.addf %3, %5 : vector<16x256xf32>
    %c0_6 = arith.constant 0 : index
    %c0_7 = arith.constant 0 : index
    %7 = vector.load %arg5[%c0_6, %c0_7] : memref<16x32xbf16, #tpu.memory_space<vmem>>, vector<16x32xbf16>
    %cst_8 = arith.constant dense<0.000000e+00> : vector<16x256xf32>
    %8 = tpu.matmul %7, %1, %cst_8 {dimension_numbers = #tpu.dot_dimension_numbers<[1], [0], [0], [1], [0, 0, 1, 1], [], []>} : vector<16x32xbf16>, vector<32x256xbf16>, vector<16x256xf32> -> vector<16x256xf32>
    %c0_9 = arith.constant 0 : index
    %c0_10 = arith.constant 0 : index
    %9 = vector.load %arg6[%c0_9, %c0_10] : memref<16x1xf32, #tpu.memory_space<vmem>>, vector<16x1xf32>
    %10 = vector.broadcast %9 : vector<16x1xf32> to vector<16x256xf32>
    %11 = arith.addf %8, %10 : vector<16x256xf32>
    %c0_11 = arith.constant 0 : index
    %c0_12 = arith.constant 0 : index
    %12 = vector.load %arg7[%c0_11, %c0_12] : memref<24x32xbf16, #tpu.memory_space<vmem>>, vector<24x32xbf16>
    %cst_13 = arith.constant dense<0.000000e+00> : vector<24x256xf32>
    %13 = tpu.matmul %12, %1, %cst_13 {dimension_numbers = #tpu.dot_dimension_numbers<[1], [0], [0], [1], [0, 0, 1, 1], [], []>} : vector<24x32xbf16>, vector<32x256xbf16>, vector<24x256xf32> -> vector<24x256xf32>
    %c0_14 = arith.constant 0 : index
    %c0_15 = arith.constant 0 : index
    %14 = vector.load %arg8[%c0_14, %c0_15] : memref<24x1xf32, #tpu.memory_space<vmem>>, vector<24x1xf32>
    %15 = vector.broadcast %14 : vector<24x1xf32> to vector<24x256xf32>
    %16 = arith.addf %13, %15 : vector<24x256xf32>
    %17 = tpu.transpose %6, [1, 0] : vector<16x256xf32> -> vector<256x16xf32>
    %18 = arith.truncf %17 : vector<256x16xf32> to vector<256x16xbf16>
    %c0_16 = arith.constant 0 : index
    %c0_17 = arith.constant 0 : index
    %c0_18 = arith.constant 0 : index
    %19 = vector.load %arg9[%c0_16, %c0_17, %c0_18] : memref<1x256x16xbf16, #tpu.memory_space<vmem>>, vector<1x256x16xbf16>
    %20 = vector.shape_cast %19 : vector<1x256x16xbf16> to vector<256x16xbf16>
    %21 = vector.shape_cast %18 : vector<256x16xbf16> to vector<1x256x16xbf16>
    tpu.vector_store %arg9[%c0_16, %c0_17, %c0_18], %21 {strides = array<i32>} : memref<1x256x16xbf16, #tpu.memory_space<vmem>>, vector<1x256x16xbf16>,
    %22 = arith.truncf %11 : vector<16x256xf32> to vector<16x256xbf16>
    %c0_19 = arith.constant 0 : index
    %c0_20 = arith.constant 0 : index
    %c0_21 = arith.constant 0 : index
    %23 = vector.load %arg10[%c0_19, %c0_20, %c0_21] : memref<1x16x256xbf16, #tpu.memory_space<vmem>>, vector<1x16x256xbf16>
    %24 = vector.shape_cast %23 : vector<1x16x256xbf16> to vector<16x256xbf16>
    %25 = vector.shape_cast %22 : vector<16x256xbf16> to vector<1x16x256xbf16>
    tpu.vector_store %arg10[%c0_19, %c0_20, %c0_21], %25 {strides = array<i32>} : memref<1x16x256xbf16, #tpu.memory_space<vmem>>, vector<1x16x256xbf16>,
    %26 = tpu.transpose %16, [1, 0] : vector<24x256xf32> -> vector<256x24xf32>
    %27 = arith.truncf %26 : vector<256x24xf32> to vector<256x24xbf16>
    %c0_22 = arith.constant 0 : index
    %c0_23 = arith.constant 0 : index
    %c0_24 = arith.constant 0 : index
    %28 = vector.load %arg11[%c0_22, %c0_23, %c0_24] : memref<1x256x24xbf16, #tpu.memory_space<vmem>>, vector<1x256x24xbf16>
    %29 = vector.shape_cast %28 : vector<1x256x24xbf16> to vector<256x24xbf16>
    %30 = vector.shape_cast %27 : vector<256x24xbf16> to vector<1x256x24xbf16>
    tpu.vector_store %arg11[%c0_22, %c0_23, %c0_24], %30 {strides = array<i32>} : memref<1x256x24xbf16, #tpu.memory_space<vmem>>, vector<1x256x24xbf16>,
    return
  }
  func.func @transform_0(%arg0: i32, %arg1: i32) -> (i32, i32, i32) {
    %c0_i32 = arith.constant 0 : i32
    %c0_i32_0 = arith.constant 0 : i32
    return %arg0, %c0_i32, %arg1 : i32, i32, i32
  }
  func.func @transform_1(%arg0: i32, %arg1: i32) -> (i32, i32) {
    %c0_i32 = arith.constant 0 : i32
    %c0_i32_0 = arith.constant 0 : i32
    %c0_i32_1 = arith.constant 0 : i32
    return %c0_i32, %c0_i32_0 : i32, i32
  }
  func.func @transform_2(%arg0: i32, %arg1: i32) -> (i32, i32) {
    %c0_i32 = arith.constant 0 : i32
    %c0_i32_0 = arith.constant 0 : i32
    %c0_i32_1 = arith.constant 0 : i32
    return %c0_i32, %c0_i32_0 : i32, i32
  }
  func.func @transform_3(%arg0: i32, %arg1: i32) -> (i32, i32) {
    %c0_i32 = arith.constant 0 : i32
    %c0_i32_0 = arith.constant 0 : i32
    %c0_i32_1 = arith.constant 0 : i32
    return %c0_i32, %c0_i32_0 : i32, i32
  }
  func.func @transform_4(%arg0: i32, %arg1: i32) -> (i32, i32) {
    %c0_i32 = arith.constant 0 : i32
    %c0_i32_0 = arith.constant 0 : i32
    %c0_i32_1 = arith.constant 0 : i32
    return %c0_i32, %c0_i32_0 : i32, i32
  }
  func.func @transform_5(%arg0: i32, %arg1: i32) -> (i32, i32) {
    %c0_i32 = arith.constant 0 : i32
    %c0_i32_0 = arith.constant 0 : i32
    %c0_i32_1 = arith.constant 0 : i32
    return %c0_i32, %c0_i32_0 : i32, i32
  }
  func.func @transform_6(%arg0: i32, %arg1: i32) -> (i32, i32) {
    %c0_i32 = arith.constant 0 : i32
    %c0_i32_0 = arith.constant 0 : i32
    %c0_i32_1 = arith.constant 0 : i32
    return %c0_i32, %c0_i32_0 : i32, i32
  }
  func.func @transform_7(%arg0: i32, %arg1: i32) -> (i32, i32, i32) {
    %c0_i32 = arith.constant 0 : i32
    %c0_i32_0 = arith.constant 0 : i32
    return %arg0, %arg1, %c0_i32 : i32, i32, i32
  }
  func.func @transform_8(%arg0: i32, %arg1: i32) -> (i32, i32, i32) {
    %c0_i32 = arith.constant 0 : i32
    %c0_i32_0 = arith.constant 0 : i32
    return %arg0, %c0_i32, %arg1 : i32, i32, i32
  }
  func.func @transform_9(%arg0: i32, %arg1: i32) -> (i32, i32, i32) {
    %c0_i32 = arith.constant 0 : i32
    %c0_i32_0 = arith.constant 0 : i32
    return %arg0, %arg1, %c0_i32 : i32, i32, i32
  }
}

</mosaic_0001>

<llo_original>
// kernel: tpu_custom_call.1
$region0: #{tpu_custom_call.1}
  #allocation0 [shape = 'u32[]', space=smem, size = 0x4, offset = 0x4, fixed_abs, tag = 'smem constant byte address 0x4 - core index']
  #allocation1 [shape = 'u32[144,128]{1,0:T(1,128)}', space=vmem, size = 0x12000, scoped, tag = 'internal scratch']
  %s0 = inlined_call_operand.hbm [shape: bf16[2,32,256], index: 0, kind: input, shape index: {}]
  %s1 = inlined_call_operand.vmem [shape: bf16[16,32], index: 1, kind: input, shape index: {}]
  %s2 = inlined_call_operand.vmem [shape: f32[16,1], index: 2, kind: input, shape index: {}]
  %s3 = inlined_call_operand.vmem [shape: bf16[16,32], index: 3, kind: input, shape index: {}]
  %s4 = inlined_call_operand.vmem [shape: f32[16,1], index: 4, kind: input, shape index: {}]
  %s5 = inlined_call_operand.vmem [shape: bf16[24,32], index: 5, kind: input, shape index: {}]
  %s6 = inlined_call_operand.vmem [shape: f32[24,1], index: 6, kind: input, shape index: {}]
  %s7 = inlined_call_operand.vmem [shape: bf16[2,256,16], index: 7, kind: output, shape index: {0}]
  %s8 = inlined_call_operand.hbm [shape: bf16[2,16,256], index: 8, kind: output, shape index: {1}]
  %s9 = inlined_call_operand.vmem [shape: bf16[2,256,24], index: 9, kind: output, shape index: {2}]
  %10 = xla_tuple %s7, %s8, %s9
  %s11 = sld [smem:[#allocation0]]
  $region81: #{tpu_custom_call.1} parent=0
    _
  %s13 = ssub.s32 1, %s11
  %s14 = scalar_select 0, %s13, %s11
  $region1: #{tpu_custom_call.1} parent=0
    #allocation2 [shape = 'u8[32768]{0}', space=vmem, size = 0x8000, scoped, tag = 'input window, operand 0']
    #allocation3 [shape = 's32[2]{0}', space=sflag, size = 0x8, scoped, tag = 'scoped memory for tpu_custom_call.1']
    #allocation4 [shape = 's32[2]{0}', space=sflag, size = 0x8, scoped, tag = 'scoped memory for tpu_custom_call.1']
    #allocation5 [shape = 'u8[16384]{0}', space=vmem, size = 0x4000, scoped, tag = 'output window, operand 1']
    %15 = vsyncpa [#allocation3], 0
    %s16 = scalar_lea.sflag [#allocation3], 1
    %17 = vsyncpa %s16, 0
    %18 = vsyncpa [#allocation4], 0
    %s19 = scalar_lea.sflag [#allocation4], 1
    %20 = vsyncpa %s19, 0
    loop: start=0, step=1, limit=4
    $region2: #{tpu_custom_call.1} parent=1 // loop_pre_header
      _
    $region3: #{tpu_custom_call.1} parent=1 // loop_header
      %s22 = sphi 0, %s26
      %p23 = scmp.ge.s32.totalorder %s22, 4
      %s29 = sphi 0, %s41
      %s30 = sphi 0, %s37
      %s31 = sphi 0, %s29
      %s32 = sphi 0, %s30
      %s33 = sphi 0, %s31
      %s34 = sphi 0, %s32
      %s46 = sphi 0, %s48
      %s49 = sphi 0, %s46
      %s50 = sphi 0, %s49
      %s66 = sphi 0, %s50
      %s70 = sphi 0, %s70
      %s72 = sphi 0, %s70
      %s73 = sphi 0, %s72
      %s87 = sphi 0, %s73
      %s91 = sphi 0, %s91
      %s93 = sphi 0, %s91
      %s94 = sphi 0, %s93
      %s108 = sphi 0, %s94
      %s112 = sphi 0, %s112
      %s114 = sphi 0, %s112
      %s115 = sphi 0, %s114
      %s129 = sphi 0, %s115
      %s133 = sphi 0, %s133
      %s135 = sphi 0, %s133
      %s136 = sphi 0, %s135
      %s150 = sphi 0, %s136
      %s154 = sphi 0, %s154
      %s156 = sphi 0, %s154
      %s157 = sphi 0, %s156
      %s171 = sphi 0, %s157
      %s175 = sphi 0, %s175
      %s177 = sphi 0, %s175
      %s178 = sphi 0, %s177
      %s192 = sphi 0, %s178
      %s200 = sphi 0, %s202
      %s203 = sphi 0, %s200
      %s204 = sphi 0, %s203
      %s220 = sphi 0, %s204
      %s228 = sphi 0, %s230
      %s231 = sphi 0, %s228
      %s232 = sphi 0, %s231
      %s248 = sphi 0, %s232
      %s256 = sphi 0, %s258
      %s259 = sphi 0, %s256
      %s260 = sphi 0, %s259
      %s276 = sphi 0, %s260
    $region4: #{tpu_custom_call.1} parent=1 // loop_header_branch
      %25 = sbr.rel (%p23) target = $region8
    $region5: #{tpu_custom_call.1} parent=1 // loop_body
      %s27 = ssub.s32 %s22, 1
      %s28 = ssub.s32 %s22, 2
      %s35 = sadd.s32 1, %s30
      %p36 = scmp.ge.s32.totalorder %s35, 1
      %s37 = scalar_select %p36, 0, %s35
      %s38 = sadd.s32 1, %s29
      %s39 = scalar_select %p36, %s38, %s29
      %p40 = scmp.ge.s32.totalorder %s39, 2
      %s41 = scalar_select %p40, 0, %s39
      %s42 = ssub.s32 %s29, %s41
      %s43 = ssub.s32 %s30, %s37
      %s44 = sor.u32 %s42, %s43
      %p45 = scmp.eq.s32.totalorder %s44, 0
      %s47 = sadd.s32 %s46, 1
      %s48 = scalar_select %p45, %s46, %s47
      %p51 = pneg %p45
      %p52 = scmp.eq.s32.totalorder %s22, 1
      %p53 = por %p51, %p52
      %p54 = scmp.ne.s32.totalorder %s46, %s49
      %p55 = scmp.eq.s32.totalorder %s22, 0
      %p56 = por %p54, %p55
      %p57 = scmp.ne.s32.totalorder %s46, %s49
      %p58 = scmp.eq.s32.totalorder %s27, 1
      %p59 = por %p57, %p58
      %p60 = scmp.ne.s32.totalorder %s49, %s50
      %p61 = scmp.eq.s32.totalorder %s27, 0
      %p62 = por %p60, %p61
      %p63 = scmp.ne.s32.totalorder %s49, %s50
      %p64 = scmp.eq.s32.totalorder %s28, 1
      %p65 = por %p63, %p64
      %p67 = scmp.ne.s32.totalorder %s50, %s66
      %p68 = scmp.eq.s32.totalorder %s28, 0
      %p69 = por %p67, %p68
      %s71 = sadd.s32 %s70, 1
      %p74 = scmp.eq.s32.totalorder %s22, 1
      %p75 = scmp.ne.s32.totalorder %s70, %s72
      %p76 = scmp.eq.s32.totalorder %s22, 0
      %p77 = por %p75, %p76
      %p78 = scmp.ne.s32.totalorder %s70, %s72
      %p79 = scmp.eq.s32.totalorder %s27, 1
      %p80 = por %p78, %p79
      %p81 = scmp.ne.s32.totalorder %s72, %s73
      %p82 = scmp.eq.s32.totalorder %s27, 0
      %p83 = por %p81, %p82
      %p84 = scmp.ne.s32.totalorder %s72, %s73
      %p85 = scmp.eq.s32.totalorder %s28, 1
      %p86 = por %p84, %p85
      %p88 = scmp.ne.s32.totalorder %s73, %s87
      %p89 = scmp.eq.s32.totalorder %s28, 0
      %p90 = por %p88, %p89
      %s92 = sadd.s32 %s91, 1
      %p95 = scmp.eq.s32.totalorder %s22, 1
      %p96 = scmp.ne.s32.totalorder %s91, %s93
      %p97 = scmp.eq.s32.totalorder %s22, 0
      %p98 = por %p96, %p97
      %p99 = scmp.ne.s32.totalorder %s91, %s93
      %p100 = scmp.eq.s32.totalorder %s27, 1
      %p101 = por %p99, %p100
      %p102 = scmp.ne.s32.totalorder %s93, %s94
      %p103 = scmp.eq.s32.totalorder %s27, 0
      %p104 = por %p102, %p103
      %p105 = scmp.ne.s32.totalorder %s93, %s94
      %p106 = scmp.eq.s32.totalorder %s28, 1
      %p107 = por %p105, %p106
      %p109 = scmp.ne.s32.totalorder %s94, %s108
      %p110 = scmp.eq.s32.totalorder %s28, 0
      %p111 = por %p109, %p110
      %s113 = sadd.s32 %s112, 1
      %p116 = scmp.eq.s32.totalorder %s22, 1
      %p117 = scmp.ne.s32.totalorder %s112, %s114
      %p118 = scmp.eq.s32.totalorder %s22, 0
      %p119 = por %p117, %p118
      %p120 = scmp.ne.s32.totalorder %s112, %s114
      %p121 = scmp.eq.s32.totalorder %s27, 1
      %p122 = por %p120, %p121
      %p123 = scmp.ne.s32.totalorder %s114, %s115
      %p124 = scmp.eq.s32.totalorder %s27, 0
      %p125 = por %p123, %p124
      %p126 = scmp.ne.s32.totalorder %s114, %s115
      %p127 = scmp.eq.s32.totalorder %s28, 1
      %p128 = por %p126, %p127
      %p130 = scmp.ne.s32.totalorder %s115, %s129
      %p131 = scmp.eq.s32.totalorder %s28, 0
      %p132 = por %p130, %p131
      %s134 = sadd.s32 %s133, 1
      %p137 = scmp.eq.s32.totalorder %s22, 1
      %p138 = scmp.ne.s32.totalorder %s133, %s135
      %p139 = scmp.eq.s32.totalorder %s22, 0
      %p140 = por %p138, %p139
      %p141 = scmp.ne.s32.totalorder %s133, %s135
      %p142 = scmp.eq.s32.totalorder %s27, 1
      %p143 = por %p141, %p142
      %p144 = scmp.ne.s32.totalorder %s135, %s136
      %p145 = scmp.eq.s32.totalorder %s27, 0
      %p146 = por %p144, %p145
      %p147 = scmp.ne.s32.totalorder %s135, %s136
      %p148 = scmp.eq.s32.totalorder %s28, 1
      %p149 = por %p147, %p148
      %p151 = scmp.ne.s32.totalorder %s136, %s150
      %p152 = scmp.eq.s32.totalorder %s28, 0
      %p153 = por %p151, %p152
      %s155 = sadd.s32 %s154, 1
      %p158 = scmp.eq.s32.totalorder %s22, 1
      %p159 = scmp.ne.s32.totalorder %s154, %s156
      %p160 = scmp.eq.s32.totalorder %s22, 0
      %p161 = por %p159, %p160
      %p162 = scmp.ne.s32.totalorder %s154, %s156
      %p163 = scmp.eq.s32.totalorder %s27, 1
      %p164 = por %p162, %p163
      %p165 = scmp.ne.s32.totalorder %s156, %s157
      %p166 = scmp.eq.s32.totalorder %s27, 0
      %p167 = por %p165, %p166
      %p168 = scmp.ne.s32.totalorder %s156, %s157
      %p169 = scmp.eq.s32.totalorder %s28, 1
      %p170 = por %p168, %p169
      %p172 = scmp.ne.s32.totalorder %s157, %s171
      %p173 = scmp.eq.s32.totalorder %s28, 0
      %p174 = por %p172, %p173
      %s176 = sadd.s32 %s175, 1
      %p179 = scmp.eq.s32.totalorder %s22, 1
      %p180 = scmp.ne.s32.totalorder %s175, %s177
      %p181 = scmp.eq.s32.totalorder %s22, 0
      %p182 = por %p180, %p181
      %p183 = scmp.ne.s32.totalorder %s175, %s177
      %p184 = scmp.eq.s32.totalorder %s27, 1
      %p185 = por %p183, %p184
      %p186 = scmp.ne.s32.totalorder %s177, %s178
      %p187 = scmp.eq.s32.totalorder %s27, 0
      %p188 = por %p186, %p187
      %p189 = scmp.ne.s32.totalorder %s177, %s178
      %p190 = scmp.eq.s32.totalorder %s28, 1
      %p191 = por %p189, %p190
      %p193 = scmp.ne.s32.totalorder %s178, %s192
      %p194 = scmp.eq.s32.totalorder %s28, 0
      %p195 = por %p193, %p194
      %s196 = ssub.s32 %s29, %s41
      %s197 = ssub.s32 %s30, %s37
      %s198 = sor.u32 %s196, %s197
      %p199 = scmp.eq.s32.totalorder %s198, 0
      %s201 = sadd.s32 %s200, 1
      %s202 = scalar_select %p199, %s200, %s201
      %p205 = pneg %p199
      %p206 = scmp.eq.s32.totalorder %s22, 1
      %p207 = por %p205, %p206
      %p208 = scmp.ne.s32.totalorder %s200, %s203
      %p209 = scmp.eq.s32.totalorder %s22, 0
      %p210 = por %p208, %p209
      %p211 = scmp.ne.s32.totalorder %s200, %s203
      %p212 = scmp.eq.s32.totalorder %s27, 1
      %p213 = por %p211, %p212
      %p214 = scmp.ne.s32.totalorder %s203, %s204
      %p215 = scmp.eq.s32.totalorder %s27, 0
      %p216 = por %p214, %p215
      %p217 = scmp.ne.s32.totalorder %s203, %s204
      %p218 = scmp.eq.s32.totalorder %s28, 1
      %p219 = por %p217, %p218
      %p221 = scmp.ne.s32.totalorder %s204, %s220
      %p222 = scmp.eq.s32.totalorder %s28, 0
      %p223 = por %p221, %p222
      %s224 = ssub.s32 %s29, %s41
      %s225 = ssub.s32 %s30, %s37
      %s226 = sor.u32 %s224, %s225
      %p227 = scmp.eq.s32.totalorder %s226, 0
      %s229 = sadd.s32 %s228, 1
      %s230 = scalar_select %p227, %s228, %s229
      %p233 = pneg %p227
      %p234 = scmp.eq.s32.totalorder %s22, 1
      %p235 = por %p233, %p234
      %p236 = scmp.ne.s32.totalorder %s228, %s231
      %p237 = scmp.eq.s32.totalorder %s22, 0
      %p238 = por %p236, %p237
      %p239 = scmp.ne.s32.totalorder %s228, %s231
      %p240 = scmp.eq.s32.totalorder %s27, 1
      %p241 = por %p239, %p240
      %p242 = scmp.ne.s32.totalorder %s231, %s232
      %p243 = scmp.eq.s32.totalorder %s27, 0
      %p244 = por %p242, %p243
      %p245 = scmp.ne.s32.totalorder %s231, %s232
      %p246 = scmp.eq.s32.totalorder %s28, 1
      %p247 = por %p245, %p246
      %p249 = scmp.ne.s32.totalorder %s232, %s248
      %p250 = scmp.eq.s32.totalorder %s28, 0
      %p251 = por %p249, %p250
      %s252 = ssub.s32 %s29, %s41
      %s253 = ssub.s32 %s30, %s37
      %s254 = sor.u32 %s252, %s253
      %p255 = scmp.eq.s32.totalorder %s254, 0
      %s257 = sadd.s32 %s256, 1
      %s258 = scalar_select %p255, %s256, %s257
      %p261 = pneg %p255
      %p262 = scmp.eq.s32.totalorder %s22, 1
      %p263 = por %p261, %p262
      %p264 = scmp.ne.s32.totalorder %s256, %s259
      %p265 = scmp.eq.s32.totalorder %s22, 0
      %p266 = por %p264, %p265
      %p267 = scmp.ne.s32.totalorder %s256, %s259
      %p268 = scmp.eq.s32.totalorder %s27, 1
      %p269 = por %p267, %p268
      %p270 = scmp.ne.s32.totalorder %s259, %s260
      %p271 = scmp.eq.s32.totalorder %s27, 0
      %p272 = por %p270, %p271
      %p273 = scmp.ne.s32.totalorder %s259, %s260
      %p274 = scmp.eq.s32.totalorder %s28, 1
      %p275 = por %p273, %p274
      %p277 = scmp.ne.s32.totalorder %s260, %s276
      %p278 = scmp.eq.s32.totalorder %s28, 0
      %p279 = por %p277, %p278
      %p280 = scmp.le.s32.totalorder 1, %s22
      %p281 = scmp.lt.s32.totalorder %s22, 3
      %p282 = pnand %p280, %p281
      %p283 = pneg %p282
      // Predicated region
      $region9: #{tpu_custom_call.1} parent=5 // pred_check
        _
      $region10: #{tpu_custom_call.1} parent=5 // pred_check_branch
        %285 = sbr.rel (%p282) target = $region12
      $region11: #{tpu_custom_call.1} parent=5 // pred_region
        %s286 = ssub.s32 %s22, 1
        // Predicated region
        $region13: #{tpu_custom_call.1} parent=11 // pred_check
          %p287 = pneg %p83
        $region14: #{tpu_custom_call.1} parent=11 // pred_check_branch
          %289 = sbr.rel (%p287) target = $region16
        $region15: #{tpu_custom_call.1} parent=11 // pred_region
          _
        $region16: #{tpu_custom_call.1} parent=11 // pred_fallthru
          _
        // Predicated region
        $region17: #{tpu_custom_call.1} parent=11 // pred_check
          %p290 = pneg %p104
        $region18: #{tpu_custom_call.1} parent=11 // pred_check_branch
          %292 = sbr.rel (%p290) target = $region20
        $region19: #{tpu_custom_call.1} parent=11 // pred_region
          _
        $region20: #{tpu_custom_call.1} parent=11 // pred_fallthru
          _
        // Predicated region
        $region21: #{tpu_custom_call.1} parent=11 // pred_check
          %p293 = pneg %p125
        $region22: #{tpu_custom_call.1} parent=11 // pred_check_branch
          %295 = sbr.rel (%p293) target = $region24
        $region23: #{tpu_custom_call.1} parent=11 // pred_region
          _
        $region24: #{tpu_custom_call.1} parent=11 // pred_fallthru
          _
        // Predicated region
        $region25: #{tpu_custom_call.1} parent=11 // pred_check
          %p296 = pneg %p146
        $region26: #{tpu_custom_call.1} parent=11 // pred_check_branch
          %298 = sbr.rel (%p296) target = $region28
        $region27: #{tpu_custom_call.1} parent=11 // pred_region
          _
        $region28: #{tpu_custom_call.1} parent=11 // pred_fallthru
          _
        // Predicated region
        $region29: #{tpu_custom_call.1} parent=11 // pred_check
          %p299 = pneg %p167
        $region30: #{tpu_custom_call.1} parent=11 // pred_check_branch
          %301 = sbr.rel (%p299) target = $region32
        $region31: #{tpu_custom_call.1} parent=11 // pred_region
          _
        $region32: #{tpu_custom_call.1} parent=11 // pred_fallthru
          _
        // Predicated region
        $region33: #{tpu_custom_call.1} parent=11 // pred_check
          %p302 = pneg %p188
        $region34: #{tpu_custom_call.1} parent=11 // pred_check_branch
          %304 = sbr.rel (%p302) target = $region36
        $region35: #{tpu_custom_call.1} parent=11 // pred_region
          _
        $region36: #{tpu_custom_call.1} parent=11 // pred_fallthru
          _
      $region12: #{tpu_custom_call.1} parent=5 // pred_fallthru
        _
      %p305 = scmp.lt.s32.totalorder %s22, 2
      // Predicated region
      $region37: #{tpu_custom_call.1} parent=5 // pred_check
        %p306 = pneg %p305
      $region38: #{tpu_custom_call.1} parent=5 // pred_check_branch
        %308 = sbr.rel (%p306) target = $region40
      $region39: #{tpu_custom_call.1} parent=5 // pred_region
        // Predicated region
        $region41: #{tpu_custom_call.1} parent=39 // pred_check
          %p309 = pneg %p56
        $region42: #{tpu_custom_call.1} parent=39 // pred_check_branch
          %311 = sbr.rel (%p309) target = $region44
        $region43: #{tpu_custom_call.1} parent=39 // pred_region
          %s312 = sand.u32 %s46, 1
          %s313 = scalar_lea.sflag [#allocation3], %s312
          %s314 = sand.u32 %s46, 1
          %s315 = smul.addr %s314, 32
          %s316 = scalar_lea.vmem [#allocation2], %s315
          %s317 = smul.u32 2, %s30
          %s319 = ssub.s32 512, 512
          %320 = vsyncadd %s313, %s319
          %s321 = smul.addr %s29, 8
          %s322 = sadd.s32 %s317, %s321
          %s323 = smul.addr %s322, 64
          %s324 = scalar_lea.hbm %s0, %s323
          %s325 = sshll.u32 %s316, 4
          %s326 = int_to_ptr.vmem [resolvable:$true] %s325
          %331 = dma.hbm_to_vmem [thread:$0]  %s324, 512, %s326, %s313, 128, 128, 8
        $region44: #{tpu_custom_call.1} parent=39 // pred_fallthru
          _
      $region40: #{tpu_custom_call.1} parent=5 // pred_fallthru
        _
      %p332 = scmp.le.s32.totalorder 1, %s22
      %p333 = scmp.lt.s32.totalorder %s22, 3
      %p334 = pnand %p332, %p333
      %p335 = pneg %p334
      // Predicated region
      $region45: #{tpu_custom_call.1} parent=5 // pred_check
        _
      $region46: #{tpu_custom_call.1} parent=5 // pred_check_branch
        %337 = sbr.rel (%p334) target = $region48
      $region47: #{tpu_custom_call.1} parent=5 // pred_region
        %s338 = ssub.s32 %s22, 1
        %s339 = sand.u32 %s49, 1
        %s340 = scalar_lea.sflag [#allocation3], %s339
        %s341 = sand.u32 %s49, 1
        %s342 = smul.addr %s341, 32
        %s343 = scalar_lea.vmem [#allocation2], %s342
        // Predicated region
        $region49: #{tpu_custom_call.1} parent=47 // pred_check
          %p344 = pneg %p62
        $region50: #{tpu_custom_call.1} parent=47 // pred_check_branch
          %346 = sbr.rel (%p344) target = $region52
        $region51: #{tpu_custom_call.1} parent=47 // pred_region
          %347 = dma.done %s340, 512
        $region52: #{tpu_custom_call.1} parent=47 // pred_fallthru
          _
        %s348 = sand.u32 %s49, 1
        %s349 = scalar_lea.sflag [#allocation3], %s348
        %s350 = sand.u32 %s49, 1
        %s351 = smul.addr %s350, 32
        %s352 = scalar_lea.vmem [#allocation2], %s351
        %p353 = pneg %p62
        %p354 = pneg %p59
        %p355 = pneg %p83
        %p356 = pneg %p80
        %p357 = pneg %p104
        %p358 = pneg %p101
        %p359 = pneg %p125
        %p360 = pneg %p122
        %p361 = pneg %p146
        %p362 = pneg %p143
        %p363 = pneg %p167
        %p364 = pneg %p164
        %p365 = pneg %p188
        %p366 = pneg %p185
        %p367 = pneg %p216
        %p368 = pneg %p213
        %s369 = smul.u32 32, %s32
        %p370 = scmp.lt.s32.totalorder %s31, 1
        %s371 = scalar_select %p370, %s31, 1
        %p372 = scmp.lt.s32.totalorder %s369, 31
        %s373 = scalar_select %p372, %s369, 31
        %s374 = smul.addr %s371, 32
        %s375 = sadd.s32 %s373, %s374
        %s376 = smul.addr %s375, 4
        %s377 = scalar_lea.vmem %s7, %s376
        %p378 = pneg %p244
        %p379 = pneg %p241
        %s380 = sand.u32 %s231, 1
        %s381 = scalar_lea.sflag [#allocation4], %s380
        %s382 = sand.u32 %s231, 1
        %s383 = smul.addr %s382, 16
        %s384 = scalar_lea.vmem [#allocation5], %s383
        %p385 = pneg %p272
        %p386 = pneg %p269
        %s387 = smul.u32 32, %s32
        %p388 = scmp.lt.s32.totalorder %s31, 1
        %s389 = scalar_select %p388, %s31, 1
        %p390 = scmp.lt.s32.totalorder %s387, 31
        %s391 = scalar_select %p390, %s387, 31
        %s392 = smul.addr %s389, 32
        %s393 = sadd.s32 %s391, %s392
        %s394 = smul.addr %s393, 4
        %s395 = scalar_lea.vmem %s9, %s394
        %s396 = smul.u32 2, %s32
        %s397 = smul.u32 32, %s32
        %p398 = scmp.lt.s32.totalorder %s31, 1
        %s399 = scalar_select %p398, %s31, 1
        %p400 = scmp.lt.s32.totalorder %s397, 31
        %s401 = scalar_select %p400, %s397, 31
        %s402 = smul.addr %s399, 32
        %s403 = sadd.s32 %s401, %s402
        %s404 = smul.addr %s403, 4
        %s405 = scalar_lea.vmem %s7, %s404
        %s406 = smul.u32 32, %s32
        %s407 = smul.u32 2, %s32
        %s408 = smul.u32 32, %s32
        %p409 = scmp.lt.s32.totalorder %s31, 1
        %s410 = scalar_select %p409, %s31, 1
        %p411 = scmp.lt.s32.totalorder %s408, 31
        %s412 = scalar_select %p411, %s408, 31
        %s413 = smul.addr %s410, 32
        %s414 = sadd.s32 %s412, %s413
        %s415 = smul.addr %s414, 4
        %s416 = scalar_lea.vmem %s9, %s415
        %s417 = smul.u32 32, %s32
        %v419 = vld [vmem:[%s343] sm:$0xff]
        %v420 = vld [vmem:[%s343 + $0x8] sm:$0xff]
        %v421 = vld [vmem:[%s343 + $0x10] sm:$0xff]
        %v422 = vld [vmem:[%s343 + $0x18] sm:$0xff]
        %v423 = vld [vmem:[%s1] sm:$0xf]
        %v424 = vld [vmem:[%s1 + $0x4] sm:$0xf]
        %v425 = vld [vmem:[%s2] sm:$0xff]
        %v426 = vld [vmem:[%s2 + $0x8] sm:$0xff]
        %428 = vset.pattern.permute.xlu0 0
        %429 = vperm.xlu0 %428, %v425
        %v430 = vpop.permute.xlu0 %429
        %433 = vset.pattern.permute.xlu0 0
        %434 = vperm.xlu0 %433, %v426
        %v435 = vpop.permute.xlu0 %434
        %v439 = vunpack.c.l.b16 %v423
        %v440 = vunpack.c.l.b16 %v424
        %v441 = vpack.c.b16 %v440, %v439
        %v446 = vunpack.c.l.b16 %v419
        %v447 = vunpack.c.h.b16 %v419
        %v448 = vunpack.c.l.b16 %v420
        %v449 = vunpack.c.h.b16 %v420
        %v450 = vunpack.c.l.b16 %v421
        %v451 = vunpack.c.h.b16 %v421
        %v452 = vunpack.c.l.b16 %v422
        %v453 = vunpack.c.h.b16 %v422
        %v454 = vpack.c.b16 %v448, %v446
        %v455 = vpack.c.b16 %v449, %v447
        %v456 = vpack.c.b16 %v452, %v450
        %v457 = vpack.c.b16 %v453, %v451
        %vm462 = vcmask 261120
        %v464 = vsel %vm462, %v441, 0
        %466 = vmatprep.subr.bf16.mxu0 %v455
        %467 = vmatpush1.bf16.msra.mxu0 %v454
        %468 = vmatprep.subr.bf16.mxu0 %v457
        %469 = vmatpush1.bf16.msra.mxu0 %v456
        %470 = vmatprep.subr.bf16.mxu0 0
        %471 = vmatpush1.bf16.msra.mxu0 0
        %472 = vmatprep.subr.bf16.mxu0 0
        %473 = vmatpush1.bf16.msra.mxu0 0
        %474 = vmatprep.subr.bf16.mxu0 0
        %475 = vmatpush1.bf16.msra.mxu0 0
        %476 = vmatprep.subr.bf16.mxu0 0
        %477 = vmatpush1.bf16.msra.mxu0 0
        %478 = vmatprep.subr.bf16.mxu0 0
        %479 = vmatpush1.bf16.msra.mxu0 0
        %480 = vmatprep.subr.bf16.mxu0 0
        %481 = vmatpush1.bf16.msra.mxu0 0
        %482 = vmatprep.subr.bf16.mxu0 0
        %483 = vmatpush1.bf16.msra.mxu0 0
        %484 = vmatprep.subr.bf16.mxu0 0
        %485 = vmatpush1.bf16.msra.mxu0 0
        %486 = vmatprep.subr.bf16.mxu0 0
        %487 = vmatpush1.bf16.msra.mxu0 0
        %488 = vmatprep.subr.bf16.mxu0 0
        %489 = vmatpush1.bf16.msra.mxu0 0
        %490 = vmatprep.subr.bf16.mxu0 0
        %491 = vmatpush1.bf16.msra.mxu0 0
        %492 = vmatprep.subr.bf16.mxu0 0
        %493 = vmatpush1.bf16.msra.mxu0 0
        %494 = vmatprep.subr.bf16.mxu0 0
        %495 = vmatpush1.bf16.msra.mxu0 0
        %496 = vmatprep.subr.bf16.mxu0 0
        %497 = vmatpush1.bf16.msra.mxu0 0
        %498 = vmatprep.mubr.bf16.mxu0 0
        %499 = vmatmul.mubr.bf16.gmra.mrb[0].mxu0 %v464
        %v500 = vpop.f32.mrb[0].mxu0
        %v501 = vadd.f32 %v430, %v500
        %v502 = vpop.f32.mrb[0].mxu0
        %v503 = vadd.f32 %v430, %v502
        %v504 = vpop.f32.mrb[0].mxu0
        %v505 = vadd.f32 %v435, %v504
        %v506 = vpop.f32.mrb[0].mxu0
        %v507 = vadd.f32 %v435, %v506
        %508 = vdwg.mxu0
        %v509 = vld [vmem:[%s3] sm:$0xf]
        %v510 = vld [vmem:[%s3 + $0x4] sm:$0xf]
        %v511 = vld [vmem:[%s4] sm:$0xff]
        %v512 = vld [vmem:[%s4 + $0x8] sm:$0xff]
        %514 = vset.pattern.permute.xlu0 0
        %515 = vperm.xlu0 %514, %v511
        %v516 = vpop.permute.xlu0 %515
        %519 = vset.pattern.permute.xlu0 0
        %520 = vperm.xlu0 %519, %v512
        %v521 = vpop.permute.xlu0 %520
        %v525 = vunpack.c.l.b16 %v509
        %v526 = vunpack.c.l.b16 %v510
        %v527 = vpack.c.b16 %v526, %v525
        %v529 = vsel %vm462, %v527, 0
        %531 = vmatprep.subr.bf16.mxu0 %v455
        %532 = vmatpush1.bf16.msra.mxu0 %v454
        %533 = vmatprep.subr.bf16.mxu0 %v457
        %534 = vmatpush1.bf16.msra.mxu0 %v456
        %535 = vmatprep.subr.bf16.mxu0 0
        %536 = vmatpush1.bf16.msra.mxu0 0
        %537 = vmatprep.subr.bf16.mxu0 0
        %538 = vmatpush1.bf16.msra.mxu0 0
        %539 = vmatprep.subr.bf16.mxu0 0
        %540 = vmatpush1.bf16.msra.mxu0 0
        %541 = vmatprep.subr.bf16.mxu0 0
        %542 = vmatpush1.bf16.msra.mxu0 0
        %543 = vmatprep.subr.bf16.mxu0 0
        %544 = vmatpush1.bf16.msra.mxu0 0
        %545 = vmatprep.subr.bf16.mxu0 0
        %546 = vmatpush1.bf16.msra.mxu0 0
        %547 = vmatprep.subr.bf16.mxu0 0
        %548 = vmatpush1.bf16.msra.mxu0 0
        %549 = vmatprep.subr.bf16.mxu0 0
        %550 = vmatpush1.bf16.msra.mxu0 0
        %551 = vmatprep.subr.bf16.mxu0 0
        %552 = vmatpush1.bf16.msra.mxu0 0
        %553 = vmatprep.subr.bf16.mxu0 0
        %554 = vmatpush1.bf16.msra.mxu0 0
        %555 = vmatprep.subr.bf16.mxu0 0
        %556 = vmatpush1.bf16.msra.mxu0 0
        %557 = vmatprep.subr.bf16.mxu0 0
        %558 = vmatpush1.bf16.msra.mxu0 0
        %559 = vmatprep.subr.bf16.mxu0 0
        %560 = vmatpush1.bf16.msra.mxu0 0
        %561 = vmatprep.subr.bf16.mxu0 0
        %562 = vmatpush1.bf16.msra.mxu0 0
        %563 = vmatprep.mubr.bf16.mxu0 0
        %564 = vmatmul.mubr.bf16.gmra.mrb[0].mxu0 %v529
        %v565 = vpop.f32.mrb[0].mxu0
        %v566 = vadd.f32 %v516, %v565
        %v567 = vpop.f32.mrb[0].mxu0
        %v568 = vadd.f32 %v516, %v567
        %v569 = vpop.f32.mrb[0].mxu0
        %v570 = vadd.f32 %v521, %v569
        %v571 = vpop.f32.mrb[0].mxu0
        %v572 = vadd.f32 %v521, %v571
        %573 = vdwg.mxu0
        %v574 = vld [vmem:[%s5] sm:$0xf]
        %v575 = vld [vmem:[%s5 + $0x4] sm:$0xf]
        %v576 = vld [vmem:[%s5 + $0x8] sm:$0xf]
        %v577 = vld [vmem:[%s6] sm:$0xff]
        %v578 = vld [vmem:[%s6 + $0x8] sm:$0xff]
        %v579 = vld [vmem:[%s6 + $0x10] sm:$0xff]
        %581 = vset.pattern.permute.xlu0 0
        %582 = vperm.xlu0 %581, %v577
        %v583 = vpop.permute.xlu0 %582
        %586 = vset.pattern.permute.xlu0 0
        %587 = vperm.xlu0 %586, %v578
        %v588 = vpop.permute.xlu0 %587
        %591 = vset.pattern.permute.xlu0 0
        %592 = vperm.xlu0 %591, %v579
        %v593 = vpop.permute.xlu0 %592
        %v598 = vunpack.c.l.b16 %v574
        %v599 = vunpack.c.l.b16 %v575
        %v600 = vunpack.c.l.b16 %v576
        %v601 = vpack.c.b16 %v599, %v598
        %v602 = vpack.c.b16 %v600, %v600
        %v604 = vsel %vm462, %v601, 0
        %v607 = vsel %vm462, %v602, 0
        %609 = vmatprep.subr.bf16.mxu0 %v455
        %610 = vmatpush1.bf16.msra.mxu0 %v454
        %611 = vmatprep.subr.bf16.mxu0 %v457
        %612 = vmatpush1.bf16.msra.mxu0 %v456
        %613 = vmatprep.subr.bf16.mxu0 0
        %614 = vmatpush1.bf16.msra.mxu0 0
        %615 = vmatprep.subr.bf16.mxu0 0
        %616 = vmatpush1.bf16.msra.mxu0 0
        %617 = vmatprep.subr.bf16.mxu0 0
        %618 = vmatpush1.bf16.msra.mxu0 0
        %619 = vmatprep.subr.bf16.mxu0 0
        %620 = vmatpush1.bf16.msra.mxu0 0
        %621 = vmatprep.subr.bf16.mxu0 0
        %622 = vmatpush1.bf16.msra.mxu0 0
        %623 = vmatprep.subr.bf16.mxu0 0
        %624 = vmatpush1.bf16.msra.mxu0 0
        %625 = vmatprep.subr.bf16.mxu0 0
        %626 = vmatpush1.bf16.msra.mxu0 0
        %627 = vmatprep.subr.bf16.mxu0 0
        %628 = vmatpush1.bf16.msra.mxu0 0
        %629 = vmatprep.subr.bf16.mxu0 0
        %630 = vmatpush1.bf16.msra.mxu0 0
        %631 = vmatprep.subr.bf16.mxu0 0
        %632 = vmatpush1.bf16.msra.mxu0 0
        %633 = vmatprep.subr.bf16.mxu0 0
        %634 = vmatpush1.bf16.msra.mxu0 0
        %635 = vmatprep.subr.bf16.mxu0 0
        %636 = vmatpush1.bf16.msra.mxu0 0
        %637 = vmatprep.subr.bf16.mxu0 0
        %638 = vmatpush1.bf16.msra.mxu0 0
        %639 = vmatprep.subr.bf16.mxu0 0
        %640 = vmatpush1.bf16.msra.mxu0 0
        %641 = vmatprep.mubr.bf16.mxu0 0
        %642 = vmatmul.mubr.bf16.gmra.mrb[0].mxu0 %v604
        %v643 = vpop.f32.mrb[0].mxu0
        %v644 = vadd.f32 %v583, %v643
        %v645 = vpop.f32.mrb[0].mxu0
        %v646 = vadd.f32 %v583, %v645
        %v647 = vpop.f32.mrb[0].mxu0
        %v648 = vadd.f32 %v588, %v647
        %v649 = vpop.f32.mrb[0].mxu0
        %v650 = vadd.f32 %v588, %v649
        %651 = vmatprep.mubr.bf16.mxu0 0
        %652 = vmatmul.mubr.bf16.gmra.mrb[0].mxu0 %v607
        %v653 = vpop.f32.mrb[0].mxu0
        %v654 = vadd.f32 %v593, %v653
        %v655 = vpop.f32.mrb[0].mxu0
        %v656 = vadd.f32 %v593, %v655
        %v657 = vpop.f32.mrb[0].mxu0
        %v658 = vpop.f32.mrb[0].mxu0
        %659 = vdwg.mxu0
        %660 = vxpose.xlu0.b32.start [1/16] %v501, 128
        %661 = vxpose.xlu0.b32.cont [2/16] %v505, 128
        %662 = vxpose.xlu0.b32.cont [3/16] 0.0, 128
        %663 = vxpose.xlu0.b32.cont [4/16] 0.0, 128
        %664 = vxpose.xlu0.b32.cont [5/16] 0.0, 128
        %665 = vxpose.xlu0.b32.cont [6/16] 0.0, 128
        %666 = vxpose.xlu0.b32.cont [7/16] 0.0, 128
        %667 = vxpose.xlu0.b32.cont [8/16] 0.0, 128
        %668 = vxpose.xlu0.b32.cont [9/16] 0.0, 128
        %669 = vxpose.xlu0.b32.cont [10/16] 0.0, 128
        %670 = vxpose.xlu0.b32.cont [11/16] 0.0, 128
        %671 = vxpose.xlu0.b32.cont [12/16] 0.0, 128
        %672 = vxpose.xlu0.b32.cont [13/16] 0.0, 128
        %673 = vxpose.xlu0.b32.cont [14/16] 0.0, 128
        %674 = vxpose.xlu0.b32.cont [15/16] 0.0, 128
        %675 = vxpose.xlu0.b32.end [16/16] 0.0, 128
        %v676 = vpop.trf.xlu0
        %v677 = vpop.trf.xlu0
        %v678 = vpop.trf.xlu0
        %v679 = vpop.trf.xlu0
        %v680 = vpop.trf.xlu0
        %v681 = vpop.trf.xlu0
        %v682 = vpop.trf.xlu0
        %v683 = vpop.trf.xlu0
        %v684 = vpop.trf.xlu0
        %v685 = vpop.trf.xlu0
        %v686 = vpop.trf.xlu0
        %v687 = vpop.trf.xlu0
        %v688 = vpop.trf.xlu0
        %v689 = vpop.trf.xlu0
        %v690 = vpop.trf.xlu0
        %v691 = vpop.trf.xlu0
        %692 = vxpose.xlu0.b32.start [1/16] %v503, 128
        %693 = vxpose.xlu0.b32.cont [2/16] %v507, 128
        %694 = vxpose.xlu0.b32.cont [3/16] 0.0, 128
        %695 = vxpose.xlu0.b32.cont [4/16] 0.0, 128
        %696 = vxpose.xlu0.b32.cont [5/16] 0.0, 128
        %697 = vxpose.xlu0.b32.cont [6/16] 0.0, 128
        %698 = vxpose.xlu0.b32.cont [7/16] 0.0, 128
        %699 = vxpose.xlu0.b32.cont [8/16] 0.0, 128
        %700 = vxpose.xlu0.b32.cont [9/16] 0.0, 128
        %701 = vxpose.xlu0.b32.cont [10/16] 0.0, 128
        %702 = vxpose.xlu0.b32.cont [11/16] 0.0, 128
        %703 = vxpose.xlu0.b32.cont [12/16] 0.0, 128
        %704 = vxpose.xlu0.b32.cont [13/16] 0.0, 128
        %705 = vxpose.xlu0.b32.cont [14/16] 0.0, 128
        %706 = vxpose.xlu0.b32.cont [15/16] 0.0, 128
        %707 = vxpose.xlu0.b32.end [16/16] 0.0, 128
        %v708 = vpop.trf.xlu0
        %v709 = vpop.trf.xlu0
        %v710 = vpop.trf.xlu0
        %v711 = vpop.trf.xlu0
        %v712 = vpop.trf.xlu0
        %v713 = vpop.trf.xlu0
        %v714 = vpop.trf.xlu0
        %v715 = vpop.trf.xlu0
        %v716 = vpop.trf.xlu0
        %v717 = vpop.trf.xlu0
        %v718 = vpop.trf.xlu0
        %v719 = vpop.trf.xlu0
        %v720 = vpop.trf.xlu0
        %v721 = vpop.trf.xlu0
        %v722 = vpop.trf.xlu0
        %v723 = vpop.trf.xlu0
        %v724 = vpack.c.bf16 %v677, %v676
        %v725 = vpack.c.bf16 %v679, %v678
        %v726 = vpack.c.bf16 %v681, %v680
        %v727 = vpack.c.bf16 %v683, %v682
        %v728 = vpack.c.bf16 %v685, %v684
        %v729 = vpack.c.bf16 %v687, %v686
        %v730 = vpack.c.bf16 %v689, %v688
        %v731 = vpack.c.bf16 %v691, %v690
        %v732 = vpack.c.bf16 %v709, %v708
        %v733 = vpack.c.bf16 %v711, %v710
        %v734 = vpack.c.bf16 %v713, %v712
        %v735 = vpack.c.bf16 %v715, %v714
        %v736 = vpack.c.bf16 %v717, %v716
        %v737 = vpack.c.bf16 %v719, %v718
        %v738 = vpack.c.bf16 %v721, %v720
        %v739 = vpack.c.bf16 %v723, %v722
        %v756 = vunpack.c.l.b16 %v724
        %v757 = vunpack.c.h.b16 %v724
        %v758 = vunpack.c.l.b16 %v725
        %v759 = vunpack.c.h.b16 %v725
        %v760 = vunpack.c.l.b16 %v726
        %v761 = vunpack.c.h.b16 %v726
        %v762 = vunpack.c.l.b16 %v727
        %v763 = vunpack.c.h.b16 %v727
        %v764 = vunpack.c.l.b16 %v728
        %v765 = vunpack.c.h.b16 %v728
        %v766 = vunpack.c.l.b16 %v729
        %v767 = vunpack.c.h.b16 %v729
        %v768 = vunpack.c.l.b16 %v730
        %v769 = vunpack.c.h.b16 %v730
        %v770 = vunpack.c.l.b16 %v731
        %v771 = vunpack.c.h.b16 %v731
        %v772 = vunpack.c.l.b16 %v732
        %v773 = vunpack.c.h.b16 %v732
        %v774 = vunpack.c.l.b16 %v733
        %v775 = vunpack.c.h.b16 %v733
        %v776 = vunpack.c.l.b16 %v734
        %v777 = vunpack.c.h.b16 %v734
        %v778 = vunpack.c.l.b16 %v735
        %v779 = vunpack.c.h.b16 %v735
        %v780 = vunpack.c.l.b16 %v736
        %v781 = vunpack.c.h.b16 %v736
        %v782 = vunpack.c.l.b16 %v737
        %v783 = vunpack.c.h.b16 %v737
        %v784 = vunpack.c.l.b16 %v738
        %v785 = vunpack.c.h.b16 %v738
        %v786 = vunpack.c.l.b16 %v739
        %v787 = vunpack.c.h.b16 %v739
        %v788 = vpack.c.b16 %v756, %v756
        %v789 = vpack.c.b16 %v757, %v757
        %v790 = vpack.c.b16 %v758, %v758
        %v791 = vpack.c.b16 %v759, %v759
        %v792 = vpack.c.b16 %v760, %v760
        %v793 = vpack.c.b16 %v761, %v761
        %v794 = vpack.c.b16 %v762, %v762
        %v795 = vpack.c.b16 %v763, %v763
        %v796 = vpack.c.b16 %v764, %v764
        %v797 = vpack.c.b16 %v765, %v765
        %v798 = vpack.c.b16 %v766, %v766
        %v799 = vpack.c.b16 %v767, %v767
        %v800 = vpack.c.b16 %v768, %v768
        %v801 = vpack.c.b16 %v769, %v769
        %v802 = vpack.c.b16 %v770, %v770
        %v803 = vpack.c.b16 %v771, %v771
        %v804 = vpack.c.b16 %v772, %v772
        %v805 = vpack.c.b16 %v773, %v773
        %v806 = vpack.c.b16 %v774, %v774
        %v807 = vpack.c.b16 %v775, %v775
        %v808 = vpack.c.b16 %v776, %v776
        %v809 = vpack.c.b16 %v777, %v777
        %v810 = vpack.c.b16 %v778, %v778
        %v811 = vpack.c.b16 %v779, %v779
        %v812 = vpack.c.b16 %v780, %v780
        %v813 = vpack.c.b16 %v781, %v781
        %v814 = vpack.c.b16 %v782, %v782
        %v815 = vpack.c.b16 %v783, %v783
        %v816 = vpack.c.b16 %v784, %v784
        %v817 = vpack.c.b16 %v785, %v785
        %v818 = vpack.c.b16 %v786, %v786
        %v819 = vpack.c.b16 %v787, %v787
        %vm852 = vcmask 125952
        %853 = vst.msk [vmem:[%s405] sm:$0xf] %vm852, %v788
        %854 = vst.msk [vmem:[%s405 + $0x4] sm:$0xf] %vm852, %v789
        %855 = vst.msk [vmem:[%s405 + $0x8] sm:$0xf] %vm852, %v790
        %856 = vst.msk [vmem:[%s405 + $0xc] sm:$0xf] %vm852, %v791
        %857 = vst.msk [vmem:[%s405 + $0x10] sm:$0xf] %vm852, %v792
        %858 = vst.msk [vmem:[%s405 + $0x14] sm:$0xf] %vm852, %v793
        %859 = vst.msk [vmem:[%s405 + $0x18] sm:$0xf] %vm852, %v794
        %860 = vst.msk [vmem:[%s405 + $0x1c] sm:$0xf] %vm852, %v795
        %861 = vst.msk [vmem:[%s405 + $0x20] sm:$0xf] %vm852, %v796
        %862 = vst.msk [vmem:[%s405 + $0x24] sm:$0xf] %vm852, %v797
        %863 = vst.msk [vmem:[%s405 + $0x28] sm:$0xf] %vm852, %v798
        %864 = vst.msk [vmem:[%s405 + $0x2c] sm:$0xf] %vm852, %v799
        %865 = vst.msk [vmem:[%s405 + $0x30] sm:$0xf] %vm852, %v800
        %866 = vst.msk [vmem:[%s405 + $0x34] sm:$0xf] %vm852, %v801
        %867 = vst.msk [vmem:[%s405 + $0x38] sm:$0xf] %vm852, %v802
        %868 = vst.msk [vmem:[%s405 + $0x3c] sm:$0xf] %vm852, %v803
        %869 = vst.msk [vmem:[%s405 + $0x40] sm:$0xf] %vm852, %v804
        %870 = vst.msk [vmem:[%s405 + $0x44] sm:$0xf] %vm852, %v805
        %871 = vst.msk [vmem:[%s405 + $0x48] sm:$0xf] %vm852, %v806
        %872 = vst.msk [vmem:[%s405 + $0x4c] sm:$0xf] %vm852, %v807
        %873 = vst.msk [vmem:[%s405 + $0x50] sm:$0xf] %vm852, %v808
        %874 = vst.msk [vmem:[%s405 + $0x54] sm:$0xf] %vm852, %v809
        %875 = vst.msk [vmem:[%s405 + $0x58] sm:$0xf] %vm852, %v810
        %876 = vst.msk [vmem:[%s405 + $0x5c] sm:$0xf] %vm852, %v811
        %877 = vst.msk [vmem:[%s405 + $0x60] sm:$0xf] %vm852, %v812
        %878 = vst.msk [vmem:[%s405 + $0x64] sm:$0xf] %vm852, %v813
        %879 = vst.msk [vmem:[%s405 + $0x68] sm:$0xf] %vm852, %v814
        %880 = vst.msk [vmem:[%s405 + $0x6c] sm:$0xf] %vm852, %v815
        %881 = vst.msk [vmem:[%s405 + $0x70] sm:$0xf] %vm852, %v816
        %882 = vst.msk [vmem:[%s405 + $0x74] sm:$0xf] %vm852, %v817
        %883 = vst.msk [vmem:[%s405 + $0x78] sm:$0xf] %vm852, %v818
        %884 = vst.msk [vmem:[%s405 + $0x7c] sm:$0xf] %vm852, %v819
        %v885 = vpack.c.bf16 %v570, %v566
        %v886 = vpack.c.bf16 %v572, %v568
        %v889 = vunpack.c.l.b16 %v885
        %v890 = vunpack.c.l.b16 %v886
        %v891 = vunpack.c.h.b16 %v885
        %v892 = vunpack.c.h.b16 %v886
        %v893 = vpack.c.b16 %v890, %v889
        %v894 = vpack.c.b16 %v892, %v891
        %897 = vst [vmem:[%s384] sm:$0xff] %v893
        %898 = vst [vmem:[%s384 + $0x8] sm:$0xff] %v894
        %899 = vxpose.xlu0.b32.start [1/16] %v644, 128
        %900 = vxpose.xlu0.b32.cont [2/16] %v648, 128
        %901 = vxpose.xlu0.b32.cont [3/16] %v654, 128
        %902 = vxpose.xlu0.b32.cont [4/16] 0.0, 128
        %903 = vxpose.xlu0.b32.cont [5/16] 0.0, 128
        %904 = vxpose.xlu0.b32.cont [6/16] 0.0, 128
        %905 = vxpose.xlu0.b32.cont [7/16] 0.0, 128
        %906 = vxpose.xlu0.b32.cont [8/16] 0.0, 128
        %907 = vxpose.xlu0.b32.cont [9/16] 0.0, 128
        %908 = vxpose.xlu0.b32.cont [10/16] 0.0, 128
        %909 = vxpose.xlu0.b32.cont [11/16] 0.0, 128
        %910 = vxpose.xlu0.b32.cont [12/16] 0.0, 128
        %911 = vxpose.xlu0.b32.cont [13/16] 0.0, 128
        %912 = vxpose.xlu0.b32.cont [14/16] 0.0, 128
        %913 = vxpose.xlu0.b32.cont [15/16] 0.0, 128
        %914 = vxpose.xlu0.b32.end [16/16] 0.0, 128
        %v915 = vpop.trf.xlu0
        %v916 = vpop.trf.xlu0
        %v917 = vpop.trf.xlu0
        %v918 = vpop.trf.xlu0
        %v919 = vpop.trf.xlu0
        %v920 = vpop.trf.xlu0
        %v921 = vpop.trf.xlu0
        %v922 = vpop.trf.xlu0
        %v923 = vpop.trf.xlu0
        %v924 = vpop.trf.xlu0
        %v925 = vpop.trf.xlu0
        %v926 = vpop.trf.xlu0
        %v927 = vpop.trf.xlu0
        %v928 = vpop.trf.xlu0
        %v929 = vpop.trf.xlu0
        %v930 = vpop.trf.xlu0
        %931 = vxpose.xlu0.b32.start [1/16] %v646, 128
        %932 = vxpose.xlu0.b32.cont [2/16] %v650, 128
        %933 = vxpose.xlu0.b32.cont [3/16] %v656, 128
        %934 = vxpose.xlu0.b32.cont [4/16] 0.0, 128
        %935 = vxpose.xlu0.b32.cont [5/16] 0.0, 128
        %936 = vxpose.xlu0.b32.cont [6/16] 0.0, 128
        %937 = vxpose.xlu0.b32.cont [7/16] 0.0, 128
        %938 = vxpose.xlu0.b32.cont [8/16] 0.0, 128
        %939 = vxpose.xlu0.b32.cont [9/16] 0.0, 128
        %940 = vxpose.xlu0.b32.cont [10/16] 0.0, 128
        %941 = vxpose.xlu0.b32.cont [11/16] 0.0, 128
        %942 = vxpose.xlu0.b32.cont [12/16] 0.0, 128
        %943 = vxpose.xlu0.b32.cont [13/16] 0.0, 128
        %944 = vxpose.xlu0.b32.cont [14/16] 0.0, 128
        %945 = vxpose.xlu0.b32.cont [15/16] 0.0, 128
        %946 = vxpose.xlu0.b32.end [16/16] 0.0, 128
        %v947 = vpop.trf.xlu0
        %v948 = vpop.trf.xlu0
        %v949 = vpop.trf.xlu0
        %v950 = vpop.trf.xlu0
        %v951 = vpop.trf.xlu0
        %v952 = vpop.trf.xlu0
        %v953 = vpop.trf.xlu0
        %v954 = vpop.trf.xlu0
        %v955 = vpop.trf.xlu0
        %v956 = vpop.trf.xlu0
        %v957 = vpop.trf.xlu0
        %v958 = vpop.trf.xlu0
        %v959 = vpop.trf.xlu0
        %v960 = vpop.trf.xlu0
        %v961 = vpop.trf.xlu0
        %v962 = vpop.trf.xlu0
        %v963 = vpack.c.bf16 %v916, %v915
        %v964 = vpack.c.bf16 %v918, %v917
        %v965 = vpack.c.bf16 %v920, %v919
        %v966 = vpack.c.bf16 %v922, %v921
        %v967 = vpack.c.bf16 %v924, %v923
        %v968 = vpack.c.bf16 %v926, %v925
        %v969 = vpack.c.bf16 %v928, %v927
        %v970 = vpack.c.bf16 %v930, %v929
        %v971 = vpack.c.bf16 %v948, %v947
        %v972 = vpack.c.bf16 %v950, %v949
        %v973 = vpack.c.bf16 %v952, %v951
        %v974 = vpack.c.bf16 %v954, %v953
        %v975 = vpack.c.bf16 %v956, %v955
        %v976 = vpack.c.bf16 %v958, %v957
        %v977 = vpack.c.bf16 %v960, %v959
        %v978 = vpack.c.bf16 %v962, %v961
        %v995 = vunpack.c.l.b16 %v963
        %v996 = vunpack.c.h.b16 %v963
        %v997 = vunpack.c.l.b16 %v964
        %v998 = vunpack.c.h.b16 %v964
        %v999 = vunpack.c.l.b16 %v965
        %v1000 = vunpack.c.h.b16 %v965
        %v1001 = vunpack.c.l.b16 %v966
        %v1002 = vunpack.c.h.b16 %v966
        %v1003 = vunpack.c.l.b16 %v967
        %v1004 = vunpack.c.h.b16 %v967
        %v1005 = vunpack.c.l.b16 %v968
        %v1006 = vunpack.c.h.b16 %v968
        %v1007 = vunpack.c.l.b16 %v969
        %v1008 = vunpack.c.h.b16 %v969
        %v1009 = vunpack.c.l.b16 %v970
        %v1010 = vunpack.c.h.b16 %v970
        %v1011 = vunpack.c.l.b16 %v971
        %v1012 = vunpack.c.h.b16 %v971
        %v1013 = vunpack.c.l.b16 %v972
        %v1014 = vunpack.c.h.b16 %v972
        %v1015 = vunpack.c.l.b16 %v973
        %v1016 = vunpack.c.h.b16 %v973
        %v1017 = vunpack.c.l.b16 %v974
        %v1018 = vunpack.c.h.b16 %v974
        %v1019 = vunpack.c.l.b16 %v975
        %v1020 = vunpack.c.h.b16 %v975
        %v1021 = vunpack.c.l.b16 %v976
        %v1022 = vunpack.c.h.b16 %v976
        %v1023 = vunpack.c.l.b16 %v977
        %v1024 = vunpack.c.h.b16 %v977
        %v1025 = vunpack.c.l.b16 %v978
        %v1026 = vunpack.c.h.b16 %v978
        %v1027 = vpack.c.b16 %v995, %v995
        %v1028 = vpack.c.b16 %v996, %v996
        %v1029 = vpack.c.b16 %v997, %v997
        %v1030 = vpack.c.b16 %v998, %v998
        %v1031 = vpack.c.b16 %v999, %v999
        %v1032 = vpack.c.b16 %v1000, %v1000
        %v1033 = vpack.c.b16 %v1001, %v1001
        %v1034 = vpack.c.b16 %v1002, %v1002
        %v1035 = vpack.c.b16 %v1003, %v1003
        %v1036 = vpack.c.b16 %v1004, %v1004
        %v1037 = vpack.c.b16 %v1005, %v1005
        %v1038 = vpack.c.b16 %v1006, %v1006
        %v1039 = vpack.c.b16 %v1007, %v1007
        %v1040 = vpack.c.b16 %v1008, %v1008
        %v1041 = vpack.c.b16 %v1009, %v1009
        %v1042 = vpack.c.b16 %v1010, %v1010
        %v1043 = vpack.c.b16 %v1011, %v1011
        %v1044 = vpack.c.b16 %v1012, %v1012
        %v1045 = vpack.c.b16 %v1013, %v1013
        %v1046 = vpack.c.b16 %v1014, %v1014
        %v1047 = vpack.c.b16 %v1015, %v1015
        %v1048 = vpack.c.b16 %v1016, %v1016
        %v1049 = vpack.c.b16 %v1017, %v1017
        %v1050 = vpack.c.b16 %v1018, %v1018
        %v1051 = vpack.c.b16 %v1019, %v1019
        %v1052 = vpack.c.b16 %v1020, %v1020
        %v1053 = vpack.c.b16 %v1021, %v1021
        %v1054 = vpack.c.b16 %v1022, %v1022
        %v1055 = vpack.c.b16 %v1023, %v1023
        %v1056 = vpack.c.b16 %v1024, %v1024
        %v1057 = vpack.c.b16 %v1025, %v1025
        %v1058 = vpack.c.b16 %v1026, %v1026
        %vm1091 = vcmask 191488
        %1092 = vst.msk [vmem:[%s416] sm:$0xf] %vm1091, %v1027
        %1093 = vst.msk [vmem:[%s416 + $0x4] sm:$0xf] %vm1091, %v1028
        %1094 = vst.msk [vmem:[%s416 + $0x8] sm:$0xf] %vm1091, %v1029
        %1095 = vst.msk [vmem:[%s416 + $0xc] sm:$0xf] %vm1091, %v1030
        %1096 = vst.msk [vmem:[%s416 + $0x10] sm:$0xf] %vm1091, %v1031
        %1097 = vst.msk [vmem:[%s416 + $0x14] sm:$0xf] %vm1091, %v1032
        %1098 = vst.msk [vmem:[%s416 + $0x18] sm:$0xf] %vm1091, %v1033
        %1099 = vst.msk [vmem:[%s416 + $0x1c] sm:$0xf] %vm1091, %v1034
        %1100 = vst.msk [vmem:[%s416 + $0x20] sm:$0xf] %vm1091, %v1035
        %1101 = vst.msk [vmem:[%s416 + $0x24] sm:$0xf] %vm1091, %v1036
        %1102 = vst.msk [vmem:[%s416 + $0x28] sm:$0xf] %vm1091, %v1037
        %1103 = vst.msk [vmem:[%s416 + $0x2c] sm:$0xf] %vm1091, %v1038
        %1104 = vst.msk [vmem:[%s416 + $0x30] sm:$0xf] %vm1091, %v1039
        %1105 = vst.msk [vmem:[%s416 + $0x34] sm:$0xf] %vm1091, %v1040
        %1106 = vst.msk [vmem:[%s416 + $0x38] sm:$0xf] %vm1091, %v1041
        %1107 = vst.msk [vmem:[%s416 + $0x3c] sm:$0xf] %vm1091, %v1042
        %1108 = vst.msk [vmem:[%s416 + $0x40] sm:$0xf] %vm1091, %v1043
        %1109 = vst.msk [vmem:[%s416 + $0x44] sm:$0xf] %vm1091, %v1044
        %1110 = vst.msk [vmem:[%s416 + $0x48] sm:$0xf] %vm1091, %v1045
        %1111 = vst.msk [vmem:[%s416 + $0x4c] sm:$0xf] %vm1091, %v1046
        %1112 = vst.msk [vmem:[%s416 + $0x50] sm:$0xf] %vm1091, %v1047
        %1113 = vst.msk [vmem:[%s416 + $0x54] sm:$0xf] %vm1091, %v1048
        %1114 = vst.msk [vmem:[%s416 + $0x58] sm:$0xf] %vm1091, %v1049
        %1115 = vst.msk [vmem:[%s416 + $0x5c] sm:$0xf] %vm1091, %v1050
        %1116 = vst.msk [vmem:[%s416 + $0x60] sm:$0xf] %vm1091, %v1051
        %1117 = vst.msk [vmem:[%s416 + $0x64] sm:$0xf] %vm1091, %v1052
        %1118 = vst.msk [vmem:[%s416 + $0x68] sm:$0xf] %vm1091, %v1053
        %1119 = vst.msk [vmem:[%s416 + $0x6c] sm:$0xf] %vm1091, %v1054
        %1120 = vst.msk [vmem:[%s416 + $0x70] sm:$0xf] %vm1091, %v1055
        %1121 = vst.msk [vmem:[%s416 + $0x74] sm:$0xf] %vm1091, %v1056
        %1122 = vst.msk [vmem:[%s416 + $0x78] sm:$0xf] %vm1091, %v1057
        %1123 = vst.msk [vmem:[%s416 + $0x7c] sm:$0xf] %vm1091, %v1058
        %s1124 = smul.u32 32, %s32
        %p1125 = scmp.lt.s32.totalorder %s31, 1
        %s1126 = scalar_select %p1125, %s31, 1
        %p1127 = scmp.lt.s32.totalorder %s1124, 31
        %s1128 = scalar_select %p1127, %s1124, 31
        %s1129 = smul.addr %s1126, 32
        %s1130 = sadd.s32 %s1128, %s1129
        %s1131 = smul.addr %s1130, 4
        %s1132 = scalar_lea.vmem %s7, %s1131
        %s1133 = sand.u32 %s231, 1
        %s1134 = scalar_lea.sflag [#allocation4], %s1133
        %s1135 = sand.u32 %s231, 1
        %s1136 = smul.addr %s1135, 16
        %s1137 = scalar_lea.vmem [#allocation5], %s1136
        %s1138 = smul.u32 32, %s32
        %p1139 = scmp.lt.s32.totalorder %s31, 1
        %s1140 = scalar_select %p1139, %s31, 1
        %p1141 = scmp.lt.s32.totalorder %s1138, 31
        %s1142 = scalar_select %p1141, %s1138, 31
        %s1143 = smul.addr %s1140, 32
        %s1144 = sadd.s32 %s1142, %s1143
        %s1145 = smul.addr %s1144, 4
        %s1146 = scalar_lea.vmem %s9, %s1145
        // Predicated region
        $region53: #{tpu_custom_call.1} parent=47 // pred_check
          %p1147 = pneg %p213
        $region54: #{tpu_custom_call.1} parent=47 // pred_check_branch
          %1149 = sbr.rel (%p1147) target = $region56
        $region55: #{tpu_custom_call.1} parent=47 // pred_region
          %s1150 = smul.u32 32, %s32
        $region56: #{tpu_custom_call.1} parent=47 // pred_fallthru
          _
        // Predicated region
        $region57: #{tpu_custom_call.1} parent=47 // pred_check
          %p1151 = pneg %p241
        $region58: #{tpu_custom_call.1} parent=47 // pred_check_branch
          %1153 = sbr.rel (%p1151) target = $region60
        $region59: #{tpu_custom_call.1} parent=47 // pred_region
          %s1154 = smul.u32 2, %s32
          %s1156 = ssub.s32 256, 256
          %1157 = vsyncadd %s1134, %s1156
          %s1158 = smul.addr %s31, 4
          %s1159 = sadd.s32 %s1154, %s1158
          %s1160 = smul.addr %s1159, 64
          %s1161 = scalar_lea.hbm %s8, %s1160
          %s1162 = sshll.u32 %s1137, 4
          %s1163 = int_to_ptr.vmem [resolvable:$true] %s1162
          %1168 = dma.vmem_to_hbm [thread:$0]  %s1163, 256, %s1161, %s1134, 128, 128, 8
        $region60: #{tpu_custom_call.1} parent=47 // pred_fallthru
          _
        // Predicated region
        $region61: #{tpu_custom_call.1} parent=47 // pred_check
          %p1169 = pneg %p269
        $region62: #{tpu_custom_call.1} parent=47 // pred_check_branch
          %1171 = sbr.rel (%p1169) target = $region64
        $region63: #{tpu_custom_call.1} parent=47 // pred_region
          %s1172 = smul.u32 32, %s32
        $region64: #{tpu_custom_call.1} parent=47 // pred_fallthru
          _
      $region48: #{tpu_custom_call.1} parent=5 // pred_fallthru
        _
      %p1173 = scmp.le.s32.totalorder 2, %s22
      // Predicated region
      $region65: #{tpu_custom_call.1} parent=5 // pred_check
        %p1174 = pneg %p1173
      $region66: #{tpu_custom_call.1} parent=5 // pred_check_branch
        %1176 = sbr.rel (%p1174) target = $region68
      $region67: #{tpu_custom_call.1} parent=5 // pred_region
        %s1177 = ssub.s32 %s22, 2
        // Predicated region
        $region69: #{tpu_custom_call.1} parent=67 // pred_check
          %p1178 = pneg %p219
        $region70: #{tpu_custom_call.1} parent=67 // pred_check_branch
          %1180 = sbr.rel (%p1178) target = $region72
        $region71: #{tpu_custom_call.1} parent=67 // pred_region
          %s1181 = smul.u32 32, %s34
          %p1182 = scmp.lt.s32.totalorder %s33, 1
          %s1183 = scalar_select %p1182, %s33, 1
          %p1184 = scmp.lt.s32.totalorder %s1181, 31
          %s1185 = scalar_select %p1184, %s1181, 31
          %s1186 = smul.addr %s1183, 32
          %s1187 = sadd.s32 %s1185, %s1186
          %s1188 = smul.addr %s1187, 4
          %s1189 = scalar_lea.vmem %s7, %s1188
        $region72: #{tpu_custom_call.1} parent=67 // pred_fallthru
          _
        // Predicated region
        $region73: #{tpu_custom_call.1} parent=67 // pred_check
          %p1190 = pneg %p247
        $region74: #{tpu_custom_call.1} parent=67 // pred_check_branch
          %1192 = sbr.rel (%p1190) target = $region76
        $region75: #{tpu_custom_call.1} parent=67 // pred_region
          %s1193 = sand.u32 %s232, 1
          %s1194 = scalar_lea.sflag [#allocation4], %s1193
          %s1195 = sand.u32 %s232, 1
          %s1196 = smul.addr %s1195, 16
          %s1197 = scalar_lea.vmem [#allocation5], %s1196
          %1198 = dma.done %s1194, 256
        $region76: #{tpu_custom_call.1} parent=67 // pred_fallthru
          _
        // Predicated region
        $region77: #{tpu_custom_call.1} parent=67 // pred_check
          %p1199 = pneg %p275
        $region78: #{tpu_custom_call.1} parent=67 // pred_check_branch
          %1201 = sbr.rel (%p1199) target = $region80
        $region79: #{tpu_custom_call.1} parent=67 // pred_region
          %s1202 = smul.u32 32, %s34
          %p1203 = scmp.lt.s32.totalorder %s33, 1
          %s1204 = scalar_select %p1203, %s33, 1
          %p1205 = scmp.lt.s32.totalorder %s1202, 31
          %s1206 = scalar_select %p1205, %s1202, 31
          %s1207 = smul.addr %s1204, 32
          %s1208 = sadd.s32 %s1206, %s1207
          %s1209 = smul.addr %s1208, 4
          %s1210 = scalar_lea.vmem %s9, %s1209
        $region80: #{tpu_custom_call.1} parent=67 // pred_fallthru
          _
      $region68: #{tpu_custom_call.1} parent=5 // pred_fallthru
        _
    $region6: #{tpu_custom_call.1} parent=1 // loop_footer
      %s26 = sadd.s32 1, %s22
    $region7: #{tpu_custom_call.1} parent=1 // loop_footer_branch
      %21 = sbr.rel target = $region3
    $region8: #{tpu_custom_call.1} parent=1 // loop_exit
      _
    %1211 = vsyncpa [#allocation3], 1
    %s1212 = scalar_lea.sflag [#allocation3], 1
    %1213 = vsyncpa %s1212, 1
    %1214 = vsyncpa [#allocation4], 1
    %s1215 = scalar_lea.sflag [#allocation4], 1
    %1216 = vsyncpa %s1215, 1

</llo_original>
